<compile_context>
chip_gen: v7x
topology: tpu7x:2x2x1
jax: 0.10.0
libtpu: 0.0.40
codegen_flags: <defaults>
</compile_context>

<pallas_src>
import functools

import jax
import jax.numpy as jnp
from jax.experimental import pallas as pl
from jax.experimental.pallas import tpu as pltpu

LANE = 128
SUBLANE = 8
HIDDEN = 256
MAX_BATCH_TILE = 128  # rows per grid step


def _round_up(n, m):
    return ((n + m - 1) // m) * m


def _policy_mlp_kernel(x_ref, w12_ref, w3_ref, b_ref, o_ref, *, c_pad, hidden):
    # x_ref:  (TB, C_pad)          bf16
    # w12_ref:(C_pad+HIDDEN, 256)  bf16   [w1 rows 0:C_pad, w2 rows C_pad:]
    # w3_ref: (HIDDEN, C_pad)      bf16
    # b_ref:  (3, max(256, C_pad)) f32    [b1, b2, b3 rows]
    x = x_ref[...]                                 # bf16
    w1 = w12_ref[0:c_pad, :]                       # bf16
    w2 = w12_ref[c_pad:c_pad + hidden, :]          # bf16
    w3 = w3_ref[...]                               # bf16
    b1 = b_ref[0:1, 0:hidden]                      # f32 (1, 256)
    b2 = b_ref[1:2, 0:hidden]                      # f32 (1, 256)
    b3 = b_ref[2:3, 0:c_pad]                       # f32 (1, C_pad)

    # fc1 + ReLU : bf16 x bf16 -> f32 accumulate
    h1 = jnp.dot(x, w1, preferred_element_type=jnp.float32) + b1
    h1 = jnp.maximum(h1, 0.0)

    # fc2 + ReLU
    h2 = jnp.dot(h1.astype(jnp.bfloat16), w2,
                 preferred_element_type=jnp.float32) + b2
    h2 = jnp.maximum(h2, 0.0)

    # fc3 + Tanh, then /100
    h3 = jnp.dot(h2.astype(jnp.bfloat16), w3,
                 preferred_element_type=jnp.float32) + b3
    o_ref[...] = jnp.tanh(h3) / 100.0


@jax.jit
def policy_net_apply(x, kernel_params):
    """Batched MLP. x: (B, C) f32 with C = D*D + D. Returns (B, C) f32."""
    w12, w3p, biasp = kernel_params
    B, C = x.shape
    hidden = w3p.shape[0]
    C_pad = w3p.shape[1]

    B8 = _round_up(max(B, 1), SUBLANE)
    TB = min(B8, MAX_BATCH_TILE)
    B_pad = _round_up(B8, TB)
    grid = B_pad // TB

    # Lane/sublane-dense, zero-padded bf16 input block (padded lanes are 0 and
    # hit zero rows of w1, so they contribute nothing).
    x_pad = jnp.pad(x.astype(jnp.bfloat16),
                    ((0, B_pad - B), (0, C_pad - C)))

    cost = pl.CostEstimate(
        flops=2 * B_pad * (C_pad * hidden + hidden * hidden + hidden * C_pad),
        transcendentals=B_pad * C_pad,
        bytes_accessed=(x_pad.size * 2 + w12.size * 2 + w3p.size * 2
                        + biasp.size * 4 + B_pad * C_pad * 4),
    )

    # VMEM budget: double-buffered x/out tiles + resident weights/biases +
    # intermediates, with 2x headroom, clamped to [4 MiB, 32 MiB].
    vmem_bytes = (2 * TB * C_pad * 2          # x (bf16, 2 buffers)
                  + 2 * TB * C_pad * 4        # out (f32, 2 buffers)
                  + 2 * w12.size * 2          # w1|w2 (bf16)
                  + 2 * w3p.size * 2          # w3 (bf16)
                  + 2 * biasp.size * 4        # biases (f32)
                  + 3 * TB * hidden * 4       # h1/h2 + slack
                  + TB * C_pad * 4)           # h3
    vmem_limit = int(min(max(4 * 1024 * 1024, 2 * vmem_bytes),
                         32 * 1024 * 1024))

    out = pl.pallas_call(
        functools.partial(_policy_mlp_kernel, c_pad=C_pad, hidden=hidden),
        out_shape=jax.ShapeDtypeStruct((B_pad, C_pad), jnp.float32),
        grid=(grid,),
        in_specs=[
            pl.BlockSpec((TB, C_pad), lambda i: (i, 0)),       # x (tiled on B)
            pl.BlockSpec(w12.shape, lambda i: (0, 0)),         # w1|w2 resident
            pl.BlockSpec(w3p.shape, lambda i: (0, 0)),         # w3 resident
            pl.BlockSpec(biasp.shape, lambda i: (0, 0)),       # biases resident
        ],
        out_specs=pl.BlockSpec((TB, C_pad), lambda i: (i, 0)),
        compiler_params=pltpu.CompilerParams(
            dimension_semantics=("parallel",),   # megacore sharding on v7x
            vmem_limit_bytes=vmem_limit,
        ),
        cost_estimate=cost,
    )(x_pad, w12, w3p, biasp)

    return out[:B, :C]


def policy_net_forward(mean, precision_component, kernel_params):
    """Replicates PolicyNet.forward for a single (mean, precision) pair."""
    D = mean.shape[0]
    x = jnp.concatenate(
        [mean.reshape(-1), precision_component.reshape(-1)]
    )[None, :].astype(jnp.float32)                      # (1, C)
    out = policy_net_apply(x, kernel_params)[0]         # (C,)
    return out[:D], out[D:].reshape((D, D))


def init_params(key, input_dim):
    """Deterministic synthetic f32 parameters matching PolicyNet's shapes."""
    C = input_dim * input_dim + input_dim
    ks = jax.random.split(key, 6)
    scale = 0.05
    w1 = scale * jax.random.normal(ks[0], (C, HIDDEN), jnp.float32)
    b1 = scale * jax.random.normal(ks[1], (HIDDEN,), jnp.float32)
    w2 = scale * jax.random.normal(ks[2], (HIDDEN, HIDDEN), jnp.float32)
    b2 = scale * jax.random.normal(ks[3], (HIDDEN,), jnp.float32)
    w3 = scale * jax.random.normal(ks[4], (HIDDEN, C), jnp.float32)
    b3 = scale * jax.random.normal(ks[5], (C,), jnp.float32)
    return (w1, b1, w2, b2, w3, b3)


def prepare_params(params, input_dim):
    """Pack/pad params: bf16 weights (w1|w2 merged, w3), one f32 bias block."""
    w1, b1, w2, b2, w3, b3 = params
    C = input_dim * input_dim + input_dim
    C_pad = _round_up(C, LANE)
    bias_w = max(HIDDEN, C_pad)

    w12 = jnp.zeros((C_pad + HIDDEN, HIDDEN), jnp.bfloat16)
    w12 = w12.at[:C, :].set(w1.astype(jnp.bfloat16))
    w12 = w12.at[C_pad:, :].set(w2.astype(jnp.bfloat16))

    w3p = jnp.zeros((HIDDEN, C_pad), jnp.bfloat16).at[:, :C].set(
        w3.astype(jnp.bfloat16))

    biasp = jnp.zeros((3, bias_w), jnp.float32)
    biasp = biasp.at[0, :HIDDEN].set(b1.astype(jnp.float32))
    biasp = biasp.at[1, :HIDDEN].set(b2.astype(jnp.float32))
    biasp = biasp.at[2, :C].set(b3.astype(jnp.float32))

    return (w12, w3p, biasp)


def reference_mlp(x, params, *, bf16_operands):
    """Pure-JAX reference.

    bf16_operands=True mimics the kernel's math exactly: bf16 operands on the
    MXU, f32 accumulation, f32 elementwise.  False = full-f32 original module.
    """
    w1, b1, w2, b2, w3, b3 = params
    if bf16_operands:
        def dot(a, b):
            return jnp.dot(a.astype(jnp.bfloat16), b.astype(jnp.bfloat16),
                           preferred_element_type=jnp.float32)
    else:
        dot = functools.partial(jnp.dot, precision=jax.lax.Precision.HIGHEST)
    h = jnp.maximum(dot(x, w1) + b1[None, :], 0.0)
    h = jnp.maximum(dot(h, w2) + b2[None, :], 0.0)
    return jnp.tanh(dot(h, w3) + b3[None, :]) / 100.0


def reference_forward(mean, precision_component, params, *, bf16_operands):
    D = mean.shape[0]
    x = jnp.concatenate(
        [mean.reshape(-1), precision_component.reshape(-1)])[None, :]
    y = reference_mlp(x, params, bf16_operands=bf16_operands)[0]
    return y[:D], y[D:].reshape((D, D))


if __name__ == "__main__":
    input_dim = 8                      # D -> C = D*D + D = 72 (padded to 128)
    C = input_dim * input_dim + input_dim

    key = jax.random.PRNGKey(0)
    kp, km, kc, kb, kb2 = jax.random.split(key, 5)

    params = init_params(kp, input_dim)
    kparams = prepare_params(params, input_dim)

    mean = jax.random.normal(km, (input_dim,), jnp.float32)
    precision_component = jax.random.normal(
        kc, (input_dim, input_dim), jnp.float32)

    # Single-sample forward (matches PolicyNet.forward semantics).
    mean_upd, prec_upd = policy_net_forward(mean, precision_component, kparams)
    jax.block_until_ready((mean_upd, prec_upd))
    assert mean_upd.shape == (input_dim,)
    assert prec_upd.shape == (input_dim, input_dim)

    # Tight check vs a reference doing identical bf16-operand / f32-acc math.
    ref_m_q, ref_p_q = reference_forward(
        mean, precision_component, params, bf16_operands=True)
    assert jnp.allclose(mean_upd, ref_m_q, atol=2e-5, rtol=1e-2)
    assert jnp.allclose(prec_upd, ref_p_q, atol=2e-5, rtol=1e-2)

    # Loose check vs the original full-f32 module (bf16 rounding drift only).
    ref_m_f, ref_p_f = reference_forward(
        mean, precision_component, params, bf16_operands=False)
    assert jnp.allclose(mean_upd, ref_m_f, atol=5e-4, rtol=5e-2)
    assert jnp.allclose(prec_upd, ref_p_f, atol=5e-4, rtol=5e-2)

    # Small batch (single grid step).
    B = 16
    xb = jax.random.normal(kb, (B, C), jnp.float32)
    yb = policy_net_apply(xb, kparams)
    jax.block_until_ready(yb)
    yref = reference_mlp(xb, params, bf16_operands=True)
    assert yb.shape == (B, C)
    assert jnp.allclose(yb, yref, atol=2e-5, rtol=1e-2)

    # Larger batch exercising the batch grid axis (grid > 1, resident weights).
    B2 = 200                            # -> B_pad = 256, TB = 128, grid = 2
    xb2 = jax.random.normal(kb2, (B2, C), jnp.float32)
    yb2 = policy_net_apply(xb2, kparams)
    jax.block_until_ready(yb2)
    yref2 = reference_mlp(xb2, params, bf16_operands=True)
    assert yb2.shape == (B2, C)
    assert jnp.allclose(yb2, yref2, atol=2e-5, rtol=1e-2)

    print("KERNEL_OK")
</pallas_src>

<mosaic_0001>
module attributes {stable_mosaic.version = 11 : i64} {
  func.func @_policy_mlp_kernel(%arg0: i32, %arg1: memref<8x128xbf16, #tpu.memory_space<vmem>>, %arg2: memref<384x256xbf16, #tpu.memory_space<vmem>>, %arg3: memref<256x128xbf16, #tpu.memory_space<vmem>>, %arg4: memref<3x256xf32, #tpu.memory_space<vmem>>, %arg5: memref<8x128xf32, #tpu.memory_space<vmem>>) attributes {dimension_semantics = [#tpu.dimension_semantics<parallel>], iteration_bounds = array<i64: 1>, scalar_prefetch = 0 : i64, scratch_operands = 0 : i64, tpu.core_type = #tpu.core_type<tc>, window_params = [{transform_indices = @transform_0, window_bounds = array<i64: 8, 128>}, {pipeline_mode = #tpu.pipeline_mode<synchronous>, transform_indices = @transform_1, window_bounds = array<i64: 384, 256>}, {pipeline_mode = #tpu.pipeline_mode<synchronous>, transform_indices = @transform_2, window_bounds = array<i64: 256, 128>}, {pipeline_mode = #tpu.pipeline_mode<synchronous>, transform_indices = @transform_3, window_bounds = array<i64: 3, 256>}, {transform_indices = @transform_4, window_bounds = array<i64: 8, 128>}]} {
    %c0 = arith.constant 0 : index
    %c0_0 = arith.constant 0 : index
    %0 = vector.load %arg1[%c0, %c0_0] : memref<8x128xbf16, #tpu.memory_space<vmem>>, vector<8x128xbf16>
    %c0_1 = arith.constant 0 : index
    %c0_2 = arith.constant 0 : index
    %1 = vector.load %arg2[%c0_1, %c0_2] : memref<384x256xbf16, #tpu.memory_space<vmem>>, vector<128x256xbf16>
    %c128 = arith.constant 128 : index
    %c0_3 = arith.constant 0 : index
    %2 = vector.load %arg2[%c128, %c0_3] : memref<384x256xbf16, #tpu.memory_space<vmem>>, vector<256x256xbf16>
    %c0_4 = arith.constant 0 : index
    %c0_5 = arith.constant 0 : index
    %3 = vector.load %arg3[%c0_4, %c0_5] : memref<256x128xbf16, #tpu.memory_space<vmem>>, vector<256x128xbf16>
    %c0_6 = arith.constant 0 : index
    %c0_7 = arith.constant 0 : index
    %4 = vector.load %arg4[%c0_6, %c0_7] : memref<3x256xf32, #tpu.memory_space<vmem>>, vector<1x256xf32>
    %c1 = arith.constant 1 : index
    %c0_8 = arith.constant 0 : index
    %5 = vector.load %arg4[%c1, %c0_8] : memref<3x256xf32, #tpu.memory_space<vmem>>, vector<1x256xf32>
    %c2 = arith.constant 2 : index
    %c0_9 = arith.constant 0 : index
    %6 = vector.load %arg4[%c2, %c0_9] : memref<3x256xf32, #tpu.memory_space<vmem>>, vector<1x128xf32>
    %cst = arith.constant dense<0.000000e+00> : vector<8x256xf32>
    %7 = tpu.matmul %0, %1, %cst {dimension_numbers = #tpu.dot_dimension_numbers<[1], [0], [0], [1], [0, 0, 1, 1], [], []>} : vector<8x128xbf16>, vector<128x256xbf16>, vector<8x256xf32> -> vector<8x256xf32>
    %8 = vector.broadcast %4 : vector<1x256xf32> to vector<8x256xf32>
    %9 = arith.addf %7, %8 : vector<8x256xf32>
    %cst_10 = arith.constant 0.000000e+00 : f32
    %10 = vector.broadcast %cst_10 : f32 to vector<8x256xf32>
    %11 = arith.maximumf %9, %10 : vector<8x256xf32>
    %12 = arith.truncf %11 : vector<8x256xf32> to vector<8x256xbf16>
    %cst_11 = arith.constant dense<0.000000e+00> : vector<8x256xf32>
    %13 = tpu.matmul %12, %2, %cst_11 {dimension_numbers = #tpu.dot_dimension_numbers<[1], [0], [0], [1], [0, 0, 1, 1], [], []>} : vector<8x256xbf16>, vector<256x256xbf16>, vector<8x256xf32> -> vector<8x256xf32>
    %14 = vector.broadcast %5 : vector<1x256xf32> to vector<8x256xf32>
    %15 = arith.addf %13, %14 : vector<8x256xf32>
    %cst_12 = arith.constant 0.000000e+00 : f32
    %16 = vector.broadcast %cst_12 : f32 to vector<8x256xf32>
    %17 = arith.maximumf %15, %16 : vector<8x256xf32>
    %18 = arith.truncf %17 : vector<8x256xf32> to vector<8x256xbf16>
    %cst_13 = arith.constant dense<0.000000e+00> : vector<8x128xf32>
    %19 = tpu.matmul %18, %3, %cst_13 {dimension_numbers = #tpu.dot_dimension_numbers<[1], [0], [0], [1], [0, 0, 1, 1], [], []>} : vector<8x256xbf16>, vector<256x128xbf16>, vector<8x128xf32> -> vector<8x128xf32>
    %20 = vector.broadcast %6 : vector<1x128xf32> to vector<8x128xf32>
    %21 = arith.addf %19, %20 : vector<8x128xf32>
    %22 = math.tanh %21 : vector<8x128xf32>
    %cst_14 = arith.constant 1.000000e+02 : f32
    %23 = vector.broadcast %cst_14 : f32 to vector<8x128xf32>
    %24 = arith.divf %22, %23 : vector<8x128xf32>
    %c0_15 = arith.constant 0 : index
    %c0_16 = arith.constant 0 : index
    %25 = vector.load %arg5[%c0_15, %c0_16] : memref<8x128xf32, #tpu.memory_space<vmem>>, vector<8x128xf32>
    tpu.vector_store %arg5[%c0_15, %c0_16], %24 {strides = array<i32>} : memref<8x128xf32, #tpu.memory_space<vmem>>, vector<8x128xf32>,
    return
  }
  func.func @transform_0(%arg0: i32) -> (i32, i32) {
    %c0_i32 = arith.constant 0 : i32
    %c0_i32_0 = arith.constant 0 : i32
    return %arg0, %c0_i32 : i32, i32
  }
  func.func @transform_1(%arg0: i32) -> (i32, i32) {
    %c0_i32 = arith.constant 0 : i32
    %c0_i32_0 = arith.constant 0 : i32
    %c0_i32_1 = arith.constant 0 : i32
    return %c0_i32, %c0_i32_0 : i32, i32
  }
  func.func @transform_2(%arg0: i32) -> (i32, i32) {
    %c0_i32 = arith.constant 0 : i32
    %c0_i32_0 = arith.constant 0 : i32
    %c0_i32_1 = arith.constant 0 : i32
    return %c0_i32, %c0_i32_0 : i32, i32
  }
  func.func @transform_3(%arg0: i32) -> (i32, i32) {
    %c0_i32 = arith.constant 0 : i32
    %c0_i32_0 = arith.constant 0 : i32
    %c0_i32_1 = arith.constant 0 : i32
    return %c0_i32, %c0_i32_0 : i32, i32
  }
  func.func @transform_4(%arg0: i32) -> (i32, i32) {
    %c0_i32 = arith.constant 0 : i32
    %c0_i32_0 = arith.constant 0 : i32
    return %arg0, %c0_i32 : i32, i32
  }
}

</mosaic_0001>

<llo_original>
// kernel: policy_net_apply.1
$region0: #{policy_net_apply.1}
  #allocation0 [shape = 'u32[]', space=smem, size = 0x4, offset = 0x4, fixed_abs, tag = 'smem constant byte address 0x4 - core index']
  #allocation1 [shape = 'u32[144,128]{1,0:T(1,128)}', space=vmem, size = 0x12000, scoped, tag = 'internal scratch']
  %s0 = inlined_call_operand.vmem [shape: bf16[8,128], index: 0, kind: input, shape index: {}]
  %s1 = inlined_call_operand.hbm [shape: bf16[384,256], index: 1, kind: input, shape index: {}]
  %s2 = inlined_call_operand.hbm [shape: bf16[256,128], index: 2, kind: input, shape index: {}]
  %s3 = inlined_call_operand.vmem [shape: f32[3,256], index: 3, kind: input, shape index: {}]
  %s4 = inlined_call_operand.vmem [shape: f32[8,128], index: 4, kind: output, shape index: {}]
  %s5 = sld [smem:[#allocation0]]
  $region34: #{policy_net_apply.1} parent=0
    _
  %s7 = ssub.s32 1, %s5
  %s8 = scalar_select 0, %s7, %s5
  $region1: #{policy_net_apply.1} parent=0
    #allocation2 [shape = 'u8[196608]{0}', space=vmem, size = 0x30000, scoped, tag = 'input window, operand 1, single buffered']
    #allocation3 [shape = 's32[1]{0}', space=sflag, size = 0x4, scoped, tag = 'scoped memory for policy_net_apply.1']
    #allocation4 [shape = 'u8[65536]{0}', space=vmem, size = 0x10000, scoped, tag = 'input window, operand 2, single buffered']
    #allocation5 [shape = 's32[1]{0}', space=sflag, size = 0x4, scoped, tag = 'scoped memory for policy_net_apply.1']
    %9 = vsyncpa [#allocation3], 0
    %10 = vsyncpa [#allocation5], 0
    // Predicated region
    $region2: #{policy_net_apply.1} parent=1 // pred_check
      _
    $region3: #{policy_net_apply.1} parent=1 // pred_check_branch
      %12 = sbr.rel (0) target = $region5
    $region4: #{policy_net_apply.1} parent=1 // pred_region
      _
    $region5: #{policy_net_apply.1} parent=1 // pred_fallthru
      _
    // Predicated region
    $region6: #{policy_net_apply.1} parent=1 // pred_check
      _
    $region7: #{policy_net_apply.1} parent=1 // pred_check_branch
      %14 = sbr.rel (0) target = $region9
    $region8: #{policy_net_apply.1} parent=1 // pred_region
      %s16 = ssub.s32 6144, 6144
      %17 = vsyncadd [#allocation3], %s16
      %s18 = sshll.u32 [#allocation2], 4
      %s19 = int_to_ptr.vmem [resolvable:$true] %s18
      %24 = dma.hbm_to_vmem [thread:$0]  %s1, 6144, %s19, [#allocation3], 128, 128, 8
    $region9: #{policy_net_apply.1} parent=1 // pred_fallthru
      _
    // Predicated region
    $region10: #{policy_net_apply.1} parent=1 // pred_check
      _
    $region11: #{policy_net_apply.1} parent=1 // pred_check_branch
      %26 = sbr.rel (0) target = $region13
    $region12: #{policy_net_apply.1} parent=1 // pred_region
      %s28 = ssub.s32 2048, 2048
      %29 = vsyncadd [#allocation5], %s28
      %s30 = sshll.u32 [#allocation4], 4
      %s31 = int_to_ptr.vmem [resolvable:$true] %s30
      %36 = dma.hbm_to_vmem [thread:$0]  %s2, 2048, %s31, [#allocation5], 64, 64, 4
    $region13: #{policy_net_apply.1} parent=1 // pred_fallthru
      _
    // Predicated region
    $region14: #{policy_net_apply.1} parent=1 // pred_check
      _
    $region15: #{policy_net_apply.1} parent=1 // pred_check_branch
      %38 = sbr.rel (0) target = $region17
    $region16: #{policy_net_apply.1} parent=1 // pred_region
      _
    $region17: #{policy_net_apply.1} parent=1 // pred_fallthru
      _
    // Predicated region
    $region18: #{policy_net_apply.1} parent=1 // pred_check
      _
    $region19: #{policy_net_apply.1} parent=1 // pred_check_branch
      %40 = sbr.rel (0) target = $region21
    $region20: #{policy_net_apply.1} parent=1 // pred_region
      %41 = dma.done [#allocation3], 6144
    $region21: #{policy_net_apply.1} parent=1 // pred_fallthru
      _
    // Predicated region
    $region22: #{policy_net_apply.1} parent=1 // pred_check
      _
    $region23: #{policy_net_apply.1} parent=1 // pred_check_branch
      %43 = sbr.rel (0) target = $region25
    $region24: #{policy_net_apply.1} parent=1 // pred_region
      %44 = dma.done [#allocation5], 2048
    $region25: #{policy_net_apply.1} parent=1 // pred_fallthru
      _
    %v46 = vld [vmem:[%s0] sm:$0xf]
    %v47 = vld [vmem:[#allocation2] sm:$0xff]
    %v48 = vld [vmem:[#allocation2 + $0x8] sm:$0xff]
    %v49 = vld [vmem:[#allocation2 + $0x10] sm:$0xff]
    %v50 = vld [vmem:[#allocation2 + $0x18] sm:$0xff]
    %v51 = vld [vmem:[#allocation2 + $0x20] sm:$0xff]
    %v52 = vld [vmem:[#allocation2 + $0x28] sm:$0xff]
    %v53 = vld [vmem:[#allocation2 + $0x30] sm:$0xff]
    %v54 = vld [vmem:[#allocation2 + $0x38] sm:$0xff]
    %v55 = vld [vmem:[#allocation2 + $0x40] sm:$0xff]
    %v56 = vld [vmem:[#allocation2 + $0x48] sm:$0xff]
    %v57 = vld [vmem:[#allocation2 + $0x50] sm:$0xff]
    %v58 = vld [vmem:[#allocation2 + $0x58] sm:$0xff]
    %v59 = vld [vmem:[#allocation2 + $0x60] sm:$0xff]
    %v60 = vld [vmem:[#allocation2 + $0x68] sm:$0xff]
    %v61 = vld [vmem:[#allocation2 + $0x70] sm:$0xff]
    %v62 = vld [vmem:[#allocation2 + $0x78] sm:$0xff]
    %v63 = vld [vmem:[#allocation2 + $0x80] sm:$0xff]
    %v64 = vld [vmem:[#allocation2 + $0x88] sm:$0xff]
    %v65 = vld [vmem:[#allocation2 + $0x90] sm:$0xff]
    %v66 = vld [vmem:[#allocation2 + $0x98] sm:$0xff]
    %v67 = vld [vmem:[#allocation2 + $0xa0] sm:$0xff]
    %v68 = vld [vmem:[#allocation2 + $0xa8] sm:$0xff]
    %v69 = vld [vmem:[#allocation2 + $0xb0] sm:$0xff]
    %v70 = vld [vmem:[#allocation2 + $0xb8] sm:$0xff]
    %v71 = vld [vmem:[#allocation2 + $0xc0] sm:$0xff]
    %v72 = vld [vmem:[#allocation2 + $0xc8] sm:$0xff]
    %v73 = vld [vmem:[#allocation2 + $0xd0] sm:$0xff]
    %v74 = vld [vmem:[#allocation2 + $0xd8] sm:$0xff]
    %v75 = vld [vmem:[#allocation2 + $0xe0] sm:$0xff]
    %v76 = vld [vmem:[#allocation2 + $0xe8] sm:$0xff]
    %v77 = vld [vmem:[#allocation2 + $0xf0] sm:$0xff]
    %v78 = vld [vmem:[#allocation2 + $0xf8] sm:$0xff]
    %v79 = vld [vmem:[#allocation2 + $0x100] sm:$0xff]
    %v80 = vld [vmem:[#allocation2 + $0x108] sm:$0xff]
    %v81 = vld [vmem:[#allocation2 + $0x110] sm:$0xff]
    %v82 = vld [vmem:[#allocation2 + $0x118] sm:$0xff]
    %v83 = vld [vmem:[#allocation2 + $0x120] sm:$0xff]
    %v84 = vld [vmem:[#allocation2 + $0x128] sm:$0xff]
    %v85 = vld [vmem:[#allocation2 + $0x130] sm:$0xff]
    %v86 = vld [vmem:[#allocation2 + $0x138] sm:$0xff]
    %v87 = vld [vmem:[#allocation2 + $0x140] sm:$0xff]
    %v88 = vld [vmem:[#allocation2 + $0x148] sm:$0xff]
    %v89 = vld [vmem:[#allocation2 + $0x150] sm:$0xff]
    %v90 = vld [vmem:[#allocation2 + $0x158] sm:$0xff]
    %v91 = vld [vmem:[#allocation2 + $0x160] sm:$0xff]
    %v92 = vld [vmem:[#allocation2 + $0x168] sm:$0xff]
    %v93 = vld [vmem:[#allocation2 + $0x170] sm:$0xff]
    %v94 = vld [vmem:[#allocation2 + $0x178] sm:$0xff]
    %v95 = vld [vmem:[#allocation4] sm:$0xf]
    %v96 = vld [vmem:[#allocation4 + $0x4] sm:$0xf]
    %v97 = vld [vmem:[#allocation4 + $0x8] sm:$0xf]
    %v98 = vld [vmem:[#allocation4 + $0xc] sm:$0xf]
    %v99 = vld [vmem:[#allocation4 + $0x10] sm:$0xf]
    %v100 = vld [vmem:[#allocation4 + $0x14] sm:$0xf]
    %v101 = vld [vmem:[#allocation4 + $0x18] sm:$0xf]
    %v102 = vld [vmem:[#allocation4 + $0x1c] sm:$0xf]
    %v103 = vld [vmem:[#allocation4 + $0x20] sm:$0xf]
    %v104 = vld [vmem:[#allocation4 + $0x24] sm:$0xf]
    %v105 = vld [vmem:[#allocation4 + $0x28] sm:$0xf]
    %v106 = vld [vmem:[#allocation4 + $0x2c] sm:$0xf]
    %v107 = vld [vmem:[#allocation4 + $0x30] sm:$0xf]
    %v108 = vld [vmem:[#allocation4 + $0x34] sm:$0xf]
    %v109 = vld [vmem:[#allocation4 + $0x38] sm:$0xf]
    %v110 = vld [vmem:[#allocation4 + $0x3c] sm:$0xf]
    %v111 = vld [vmem:[#allocation4 + $0x40] sm:$0xf]
    %v112 = vld [vmem:[#allocation4 + $0x44] sm:$0xf]
    %v113 = vld [vmem:[#allocation4 + $0x48] sm:$0xf]
    %v114 = vld [vmem:[#allocation4 + $0x4c] sm:$0xf]
    %v115 = vld [vmem:[#allocation4 + $0x50] sm:$0xf]
    %v116 = vld [vmem:[#allocation4 + $0x54] sm:$0xf]
    %v117 = vld [vmem:[#allocation4 + $0x58] sm:$0xf]
    %v118 = vld [vmem:[#allocation4 + $0x5c] sm:$0xf]
    %v119 = vld [vmem:[#allocation4 + $0x60] sm:$0xf]
    %v120 = vld [vmem:[#allocation4 + $0x64] sm:$0xf]
    %v121 = vld [vmem:[#allocation4 + $0x68] sm:$0xf]
    %v122 = vld [vmem:[#allocation4 + $0x6c] sm:$0xf]
    %v123 = vld [vmem:[#allocation4 + $0x70] sm:$0xf]
    %v124 = vld [vmem:[#allocation4 + $0x74] sm:$0xf]
    %v125 = vld [vmem:[#allocation4 + $0x78] sm:$0xf]
    %v126 = vld [vmem:[#allocation4 + $0x7c] sm:$0xf]
    %v127 = vld [vmem:[%s3] ss:$4 sm:$0x3]
    %s128 = scalar_lea.vmem %s3, 1
    %v129 = vld [vmem:[%s128] ss:$4 sm:$0x3]
    %v130 = vld [vmem:[%s3 + $0x2] sm:$0x1]
    %v132 = vlaneseq
    %v133 = vshrl.u32 %v132, 7
    %v134 = vsub.s32 0, %v133
    %v135 = vrot.slane %v127, %v134
    %v136 = vlaneseq
    %v137 = vshrl.u32 %v136, 7
    %v138 = vsub.s32 1, %v137
    %v139 = vrot.slane %v127, %v138
    %v158 = vunpack.c.l.b16 %v47
    %v159 = vunpack.c.h.b16 %v47
    %v160 = vunpack.c.l.b16 %v48
    %v161 = vunpack.c.h.b16 %v48
    %v162 = vunpack.c.l.b16 %v49
    %v163 = vunpack.c.h.b16 %v49
    %v164 = vunpack.c.l.b16 %v50
    %v165 = vunpack.c.h.b16 %v50
    %v166 = vunpack.c.l.b16 %v51
    %v167 = vunpack.c.h.b16 %v51
    %v168 = vunpack.c.l.b16 %v52
    %v169 = vunpack.c.h.b16 %v52
    %v170 = vunpack.c.l.b16 %v53
    %v171 = vunpack.c.h.b16 %v53
    %v172 = vunpack.c.l.b16 %v54
    %v173 = vunpack.c.h.b16 %v54
    %v174 = vunpack.c.l.b16 %v55
    %v175 = vunpack.c.h.b16 %v55
    %v176 = vunpack.c.l.b16 %v56
    %v177 = vunpack.c.h.b16 %v56
    %v178 = vunpack.c.l.b16 %v57
    %v179 = vunpack.c.h.b16 %v57
    %v180 = vunpack.c.l.b16 %v58
    %v181 = vunpack.c.h.b16 %v58
    %v182 = vunpack.c.l.b16 %v59
    %v183 = vunpack.c.h.b16 %v59
    %v184 = vunpack.c.l.b16 %v60
    %v185 = vunpack.c.h.b16 %v60
    %v186 = vunpack.c.l.b16 %v61
    %v187 = vunpack.c.h.b16 %v61
    %v188 = vunpack.c.l.b16 %v62
    %v189 = vunpack.c.h.b16 %v62
    %v190 = vpack.c.b16 %v160, %v158
    %v191 = vpack.c.b16 %v161, %v159
    %v192 = vpack.c.b16 %v164, %v162
    %v193 = vpack.c.b16 %v165, %v163
    %v194 = vpack.c.b16 %v168, %v166
    %v195 = vpack.c.b16 %v169, %v167
    %v196 = vpack.c.b16 %v172, %v170
    %v197 = vpack.c.b16 %v173, %v171
    %v198 = vpack.c.b16 %v176, %v174
    %v199 = vpack.c.b16 %v177, %v175
    %v200 = vpack.c.b16 %v180, %v178
    %v201 = vpack.c.b16 %v181, %v179
    %v202 = vpack.c.b16 %v184, %v182
    %v203 = vpack.c.b16 %v185, %v183
    %v204 = vpack.c.b16 %v188, %v186
    %v205 = vpack.c.b16 %v189, %v187
    %222 = vmatprep.subr.bf16.mxu0 %v191
    %223 = vmatpush1.bf16.msra.mxu0 %v190
    %224 = vmatprep.subr.bf16.mxu0 %v193
    %225 = vmatpush1.bf16.msra.mxu0 %v192
    %226 = vmatprep.subr.bf16.mxu0 %v195
    %227 = vmatpush1.bf16.msra.mxu0 %v194
    %228 = vmatprep.subr.bf16.mxu0 %v197
    %229 = vmatpush1.bf16.msra.mxu0 %v196
    %230 = vmatprep.subr.bf16.mxu0 %v199
    %231 = vmatpush1.bf16.msra.mxu0 %v198
    %232 = vmatprep.subr.bf16.mxu0 %v201
    %233 = vmatpush1.bf16.msra.mxu0 %v200
    %234 = vmatprep.subr.bf16.mxu0 %v203
    %235 = vmatpush1.bf16.msra.mxu0 %v202
    %236 = vmatprep.subr.bf16.mxu0 %v205
    %237 = vmatpush1.bf16.msra.mxu0 %v204
    %238 = vmatprep.subr.bf16.mxu0 0
    %239 = vmatpush1.bf16.msra.mxu0 0
    %240 = vmatprep.subr.bf16.mxu0 0
    %241 = vmatpush1.bf16.msra.mxu0 0
    %242 = vmatprep.subr.bf16.mxu0 0
    %243 = vmatpush1.bf16.msra.mxu0 0
    %244 = vmatprep.subr.bf16.mxu0 0
    %245 = vmatpush1.bf16.msra.mxu0 0
    %246 = vmatprep.subr.bf16.mxu0 0
    %247 = vmatpush1.bf16.msra.mxu0 0
    %248 = vmatprep.subr.bf16.mxu0 0
    %249 = vmatpush1.bf16.msra.mxu0 0
    %250 = vmatprep.subr.bf16.mxu0 0
    %251 = vmatpush1.bf16.msra.mxu0 0
    %252 = vmatprep.subr.bf16.mxu0 0
    %253 = vmatpush1.bf16.msra.mxu0 0
    %254 = vmatprep.mubr.bf16.mxu0 0
    %255 = vmatmul.mubr.bf16.gmra.mrb[0].mxu0 %v46
    %v256 = vpop.f32.mrb[0].mxu0
    %v257 = vadd.f32 %v135, %v256
    %v258 = vpop.f32.mrb[0].mxu0
    %v259 = vadd.f32 %v139, %v258
    %v260 = vpop.f32.mrb[0].mxu0
    %v261 = vpop.f32.mrb[0].mxu0
    %262 = vdwg.mxu0
    %v263 = vmax.f32 %v257, 0.0
    %v264 = vmax.f32 %v259, 0.0
    %v265 = vpack.c.bf16 %v263, %v263
    %v266 = vpack.c.bf16 %v264, %v264
    %v268 = vlaneseq
    %v269 = vshrl.u32 %v268, 7
    %v270 = vsub.s32 0, %v269
    %v271 = vrot.slane %v129, %v270
    %v272 = vlaneseq
    %v273 = vshrl.u32 %v272, 7
    %v274 = vsub.s32 1, %v273
    %v275 = vrot.slane %v129, %v274
    %v310 = vunpack.c.l.b16 %v63
    %v311 = vunpack.c.h.b16 %v63
    %v312 = vunpack.c.l.b16 %v64
    %v313 = vunpack.c.h.b16 %v64
    %v314 = vunpack.c.l.b16 %v65
    %v315 = vunpack.c.h.b16 %v65
    %v316 = vunpack.c.l.b16 %v66
    %v317 = vunpack.c.h.b16 %v66
    %v318 = vunpack.c.l.b16 %v67
    %v319 = vunpack.c.h.b16 %v67
    %v320 = vunpack.c.l.b16 %v68
    %v321 = vunpack.c.h.b16 %v68
    %v322 = vunpack.c.l.b16 %v69
    %v323 = vunpack.c.h.b16 %v69
    %v324 = vunpack.c.l.b16 %v70
    %v325 = vunpack.c.h.b16 %v70
    %v326 = vunpack.c.l.b16 %v71
    %v327 = vunpack.c.h.b16 %v71
    %v328 = vunpack.c.l.b16 %v72
    %v329 = vunpack.c.h.b16 %v72
    %v330 = vunpack.c.l.b16 %v73
    %v331 = vunpack.c.h.b16 %v73
    %v332 = vunpack.c.l.b16 %v74
    %v333 = vunpack.c.h.b16 %v74
    %v334 = vunpack.c.l.b16 %v75
    %v335 = vunpack.c.h.b16 %v75
    %v336 = vunpack.c.l.b16 %v76
    %v337 = vunpack.c.h.b16 %v76
    %v338 = vunpack.c.l.b16 %v77
    %v339 = vunpack.c.h.b16 %v77
    %v340 = vunpack.c.l.b16 %v78
    %v341 = vunpack.c.h.b16 %v78
    %v342 = vunpack.c.l.b16 %v79
    %v343 = vunpack.c.h.b16 %v79
    %v344 = vunpack.c.l.b16 %v80
    %v345 = vunpack.c.h.b16 %v80
    %v346 = vunpack.c.l.b16 %v81
    %v347 = vunpack.c.h.b16 %v81
    %v348 = vunpack.c.l.b16 %v82
    %v349 = vunpack.c.h.b16 %v82
    %v350 = vunpack.c.l.b16 %v83
    %v351 = vunpack.c.h.b16 %v83
    %v352 = vunpack.c.l.b16 %v84
    %v353 = vunpack.c.h.b16 %v84
    %v354 = vunpack.c.l.b16 %v85
    %v355 = vunpack.c.h.b16 %v85
    %v356 = vunpack.c.l.b16 %v86
    %v357 = vunpack.c.h.b16 %v86
    %v358 = vunpack.c.l.b16 %v87
    %v359 = vunpack.c.h.b16 %v87
    %v360 = vunpack.c.l.b16 %v88
    %v361 = vunpack.c.h.b16 %v88
    %v362 = vunpack.c.l.b16 %v89
    %v363 = vunpack.c.h.b16 %v89
    %v364 = vunpack.c.l.b16 %v90
    %v365 = vunpack.c.h.b16 %v90
    %v366 = vunpack.c.l.b16 %v91
    %v367 = vunpack.c.h.b16 %v91
    %v368 = vunpack.c.l.b16 %v92
    %v369 = vunpack.c.h.b16 %v92
    %v370 = vunpack.c.l.b16 %v93
    %v371 = vunpack.c.h.b16 %v93
    %v372 = vunpack.c.l.b16 %v94
    %v373 = vunpack.c.h.b16 %v94
    %v374 = vpack.c.b16 %v312, %v310
    %v375 = vpack.c.b16 %v313, %v311
    %v376 = vpack.c.b16 %v316, %v314
    %v377 = vpack.c.b16 %v317, %v315
    %v378 = vpack.c.b16 %v320, %v318
    %v379 = vpack.c.b16 %v321, %v319
    %v380 = vpack.c.b16 %v324, %v322
    %v381 = vpack.c.b16 %v325, %v323
    %v382 = vpack.c.b16 %v328, %v326
    %v383 = vpack.c.b16 %v329, %v327
    %v384 = vpack.c.b16 %v332, %v330
    %v385 = vpack.c.b16 %v333, %v331
    %v386 = vpack.c.b16 %v336, %v334
    %v387 = vpack.c.b16 %v337, %v335
    %v388 = vpack.c.b16 %v340, %v338
    %v389 = vpack.c.b16 %v341, %v339
    %v390 = vpack.c.b16 %v344, %v342
    %v391 = vpack.c.b16 %v345, %v343
    %v392 = vpack.c.b16 %v348, %v346
    %v393 = vpack.c.b16 %v349, %v347
    %v394 = vpack.c.b16 %v352, %v350
    %v395 = vpack.c.b16 %v353, %v351
    %v396 = vpack.c.b16 %v356, %v354
    %v397 = vpack.c.b16 %v357, %v355
    %v398 = vpack.c.b16 %v360, %v358
    %v399 = vpack.c.b16 %v361, %v359
    %v400 = vpack.c.b16 %v364, %v362
    %v401 = vpack.c.b16 %v365, %v363
    %v402 = vpack.c.b16 %v368, %v366
    %v403 = vpack.c.b16 %v369, %v367
    %v404 = vpack.c.b16 %v372, %v370
    %v405 = vpack.c.b16 %v373, %v371
    %438 = vmatprep.subr.bf16.mxu0 %v375
    %439 = vmatpush1.bf16.msra.mxu0 %v374
    %440 = vmatprep.subr.bf16.mxu0 %v377
    %441 = vmatpush1.bf16.msra.mxu0 %v376
    %442 = vmatprep.subr.bf16.mxu0 %v379
    %443 = vmatpush1.bf16.msra.mxu0 %v378
    %444 = vmatprep.subr.bf16.mxu0 %v381
    %445 = vmatpush1.bf16.msra.mxu0 %v380
    %446 = vmatprep.subr.bf16.mxu0 %v383
    %447 = vmatpush1.bf16.msra.mxu0 %v382
    %448 = vmatprep.subr.bf16.mxu0 %v385
    %449 = vmatpush1.bf16.msra.mxu0 %v384
    %450 = vmatprep.subr.bf16.mxu0 %v387
    %451 = vmatpush1.bf16.msra.mxu0 %v386
    %452 = vmatprep.subr.bf16.mxu0 %v389
    %453 = vmatpush1.bf16.msra.mxu0 %v388
    %454 = vmatprep.subr.bf16.mxu0 %v391
    %455 = vmatpush1.bf16.msra.mxu0 %v390
    %456 = vmatprep.subr.bf16.mxu0 %v393
    %457 = vmatpush1.bf16.msra.mxu0 %v392
    %458 = vmatprep.subr.bf16.mxu0 %v395
    %459 = vmatpush1.bf16.msra.mxu0 %v394
    %460 = vmatprep.subr.bf16.mxu0 %v397
    %461 = vmatpush1.bf16.msra.mxu0 %v396
    %462 = vmatprep.subr.bf16.mxu0 %v399
    %463 = vmatpush1.bf16.msra.mxu0 %v398
    %464 = vmatprep.subr.bf16.mxu0 %v401
    %465 = vmatpush1.bf16.msra.mxu0 %v400
    %466 = vmatprep.subr.bf16.mxu0 %v403
    %467 = vmatpush1.bf16.msra.mxu0 %v402
    %468 = vmatprep.subr.bf16.mxu0 %v405
    %469 = vmatpush1.bf16.msra.mxu0 %v404
    %470 = vmatprep.mubr.bf16.mxu0 %v266
    %471 = vmatmul.mubr.bf16.gmra.mrb[0].mxu0 %v265
    %v472 = vpop.f32.mrb[0].mxu0
    %v473 = vadd.f32 %v271, %v472
    %v474 = vpop.f32.mrb[0].mxu0
    %v475 = vadd.f32 %v275, %v474
    %v476 = vpop.f32.mrb[0].mxu0
    %v477 = vpop.f32.mrb[0].mxu0
    %478 = vdwg.mxu0
    %v479 = vmax.f32 %v473, 0.0
    %v480 = vmax.f32 %v475, 0.0
    %v481 = vpack.c.bf16 %v479, %v479
    %v482 = vpack.c.bf16 %v480, %v480
    %v483 = vlaneseq
    %v484 = vshrl.u32 %v483, 7
    %v485 = vsub.s32 0, %v484
    %v486 = vrot.slane %v130, %v485
    %v519 = vunpack.c.l.b16 %v95
    %v520 = vunpack.c.l.b16 %v96
    %v521 = vunpack.c.l.b16 %v97
    %v522 = vunpack.c.l.b16 %v98
    %v523 = vunpack.c.l.b16 %v99
    %v524 = vunpack.c.l.b16 %v100
    %v525 = vunpack.c.l.b16 %v101
    %v526 = vunpack.c.l.b16 %v102
    %v527 = vunpack.c.l.b16 %v103
    %v528 = vunpack.c.l.b16 %v104
    %v529 = vunpack.c.l.b16 %v105
    %v530 = vunpack.c.l.b16 %v106
    %v531 = vunpack.c.l.b16 %v107
    %v532 = vunpack.c.l.b16 %v108
    %v533 = vunpack.c.l.b16 %v109
    %v534 = vunpack.c.l.b16 %v110
    %v535 = vunpack.c.l.b16 %v111
    %v536 = vunpack.c.l.b16 %v112
    %v537 = vunpack.c.l.b16 %v113
    %v538 = vunpack.c.l.b16 %v114
    %v539 = vunpack.c.l.b16 %v115
    %v540 = vunpack.c.l.b16 %v116
    %v541 = vunpack.c.l.b16 %v117
    %v542 = vunpack.c.l.b16 %v118
    %v543 = vunpack.c.l.b16 %v119
    %v544 = vunpack.c.l.b16 %v120
    %v545 = vunpack.c.l.b16 %v121
    %v546 = vunpack.c.l.b16 %v122
    %v547 = vunpack.c.l.b16 %v123
    %v548 = vunpack.c.l.b16 %v124
    %v549 = vunpack.c.l.b16 %v125
    %v550 = vunpack.c.l.b16 %v126
    %v551 = vpack.c.b16 %v520, %v519
    %v552 = vpack.c.b16 %v522, %v521
    %v553 = vpack.c.b16 %v524, %v523
    %v554 = vpack.c.b16 %v526, %v525
    %v555 = vpack.c.b16 %v528, %v527
    %v556 = vpack.c.b16 %v530, %v529
    %v557 = vpack.c.b16 %v532, %v531
    %v558 = vpack.c.b16 %v534, %v533
    %v559 = vpack.c.b16 %v536, %v535
    %v560 = vpack.c.b16 %v538, %v537
    %v561 = vpack.c.b16 %v540, %v539
    %v562 = vpack.c.b16 %v542, %v541
    %v563 = vpack.c.b16 %v544, %v543
    %v564 = vpack.c.b16 %v546, %v545
    %v565 = vpack.c.b16 %v548, %v547
    %v566 = vpack.c.b16 %v550, %v549
    %583 = vmatprep.subr.bf16.mxu0 0
    %584 = vmatpush1.bf16.msra.mxu0 %v551
    %585 = vmatprep.subr.bf16.mxu0 0
    %586 = vmatpush1.bf16.msra.mxu0 %v552
    %587 = vmatprep.subr.bf16.mxu0 0
    %588 = vmatpush1.bf16.msra.mxu0 %v553
    %589 = vmatprep.subr.bf16.mxu0 0
    %590 = vmatpush1.bf16.msra.mxu0 %v554
    %591 = vmatprep.subr.bf16.mxu0 0
    %592 = vmatpush1.bf16.msra.mxu0 %v555
    %593 = vmatprep.subr.bf16.mxu0 0
    %594 = vmatpush1.bf16.msra.mxu0 %v556
    %595 = vmatprep.subr.bf16.mxu0 0
    %596 = vmatpush1.bf16.msra.mxu0 %v557
    %597 = vmatprep.subr.bf16.mxu0 0
    %598 = vmatpush1.bf16.msra.mxu0 %v558
    %599 = vmatprep.subr.bf16.mxu0 0
    %600 = vmatpush1.bf16.msra.mxu0 %v559
    %601 = vmatprep.subr.bf16.mxu0 0
    %602 = vmatpush1.bf16.msra.mxu0 %v560
    %603 = vmatprep.subr.bf16.mxu0 0
    %604 = vmatpush1.bf16.msra.mxu0 %v561
    %605 = vmatprep.subr.bf16.mxu0 0
    %606 = vmatpush1.bf16.msra.mxu0 %v562
    %607 = vmatprep.subr.bf16.mxu0 0
    %608 = vmatpush1.bf16.msra.mxu0 %v563
    %609 = vmatprep.subr.bf16.mxu0 0
    %610 = vmatpush1.bf16.msra.mxu0 %v564
    %611 = vmatprep.subr.bf16.mxu0 0
    %612 = vmatpush1.bf16.msra.mxu0 %v565
    %613 = vmatprep.subr.bf16.mxu0 0
    %614 = vmatpush1.bf16.msra.mxu0 %v566
    %615 = vmatprep.mubr.bf16.mxu0 %v482
    %616 = vmatmul.mubr.bf16.gmra.mrb[0].mxu0 %v481
    %v617 = vpop.f32.mrb[0].mxu0
    %v618 = vadd.f32 %v486, %v617
    %v619 = vpop.f32.mrb[0].mxu0
    %v620 = vpop.f32.mrb[0].mxu0
    %v621 = vpop.f32.mrb[0].mxu0
    %622 = vdwg.mxu0
    %v623 = vtanh.pop %v618
    %v624 = vrcp.pop 100.0
    %v625 = vmul.f32 %v623, %v624
    %626 = vst [vmem:[%s4] sm:$0xff] %v625
    // Predicated region
    $region26: #{policy_net_apply.1} parent=1 // pred_check
      _
    $region27: #{policy_net_apply.1} parent=1 // pred_check_branch
      %628 = sbr.rel (0) target = $region29
    $region28: #{policy_net_apply.1} parent=1 // pred_region
      _
    $region29: #{policy_net_apply.1} parent=1 // pred_fallthru
      _
    // Predicated region
    $region30: #{policy_net_apply.1} parent=1 // pred_check
      _
    $region31: #{policy_net_apply.1} parent=1 // pred_check_branch
      %630 = sbr.rel (0) target = $region33
    $region32: #{policy_net_apply.1} parent=1 // pred_region
      _
    $region33: #{policy_net_apply.1} parent=1 // pred_fallthru
      _
    %631 = vsyncpa [#allocation3], 1
    %632 = vsyncpa [#allocation5], 1

</llo_original>
